<compile_context>
chip_gen: v6e
topology: v6e:2x2x1
jax: 0.10.0
libtpu: 0.0.40
codegen_flags: <defaults>
</compile_context>

<pallas_src>
import jax
import jax.numpy as jnp
from jax.experimental import pallas as pl
from jax.experimental.pallas import tpu as pltpu

_U_PAD = -1e9    # padded unlabeled rows: relu(u_pad - p + m) == 0, (u_pad - c_pad)^2 == 0
_P_PAD = 1e9     # padded positive cols:  relu(u - p_pad + m) == 0

_TILE_NU_MAX = 512     # sublane-dim tile cap (multiple of 8)
_TILE_NP_MAX = 1024    # lane-dim tile cap (multiple of 128); acc tile = 2 MiB f32


def _round_up(x, m):
    return ((x + m - 1) // m) * m


def _pan_loss_kernel(params_ref, u_ref, p_ref, c_ref, out_ref, acc_ref):
    """Grid point (i, j): Nu tile i (parallel), Np tile j (reduction, innermost)."""
    alpha = params_ref[0]
    margin = params_ref[1]
    j = pl.program_id(1)

    @pl.when(j == 0)
    def _init():
        acc_ref[...] = jnp.zeros_like(acc_ref)

    u = u_ref[...]                                   # (tile_nu, 1)
    # Fold margin into the O(tile_nu) column once, before the O(tile_nu*tile_np) broadcast.
    score = (u + margin) - p_ref[...]                # (tile_nu, tile_np)
    acc_ref[...] += jnp.maximum(score, 0.0)          # VALU-only per-tile accumulate

    @pl.when(j == pl.num_programs(1) - 1)
    def _finalize():
        disc_partial = jnp.sum(acc_ref[...])         # single XLU reduce per Nu tile
        d = u - c_ref[...]                           # O(tile_nu): negligible
        cls_partial = jnp.sum(d * d)
        val = disc_partial - alpha * cls_partial
        # Lane-dense (1, 128) unmasked store; wrapper picks lane 0 per tile.
        out_ref[...] = jnp.full(out_ref.shape, val, dtype=out_ref.dtype)


def pan_discriminator_distance_loss(disc_positive_probs,
                                    disc_unlabeled_probs,
                                    cls_unlabeled_probs,
                                    *, alpha, margin):
    nu = disc_unlabeled_probs.shape[0]
    npos = disc_positive_probs.shape[0]

    tile_nu = min(_TILE_NU_MAX, _round_up(nu, 8))
    tile_np = min(_TILE_NP_MAX, _round_up(npos, 128))
    nu_pad = _round_up(nu, tile_nu)
    np_pad = _round_up(npos, tile_np)
    num_i = nu_pad // tile_nu
    num_j = np_pad // tile_np

    u = disc_unlabeled_probs.astype(jnp.float32)
    c = cls_unlabeled_probs.astype(jnp.float32)
    p = disc_positive_probs.astype(jnp.float32)

    # Sentinel padding -> padded rows/cols contribute exactly 0 to both terms.
    u2 = jnp.full((nu_pad, 1), _U_PAD, jnp.float32).at[:nu, 0].set(u)
    c2 = jnp.full((nu_pad, 1), _U_PAD, jnp.float32).at[:nu, 0].set(c)
    p2 = jnp.full((1, np_pad), _P_PAD, jnp.float32).at[0, :npos].set(p)
    params = jnp.array([alpha, margin], dtype=jnp.float32)   # SMEM: no recompile on change

    cost = pl.CostEstimate(
        flops=3 * nu_pad * np_pad + 3 * nu_pad,
        transcendentals=0,
        bytes_accessed=4 * (2 * nu_pad + np_pad + num_i * 128),
    )

    out = pl.pallas_call(
        _pan_loss_kernel,
        out_shape=jax.ShapeDtypeStruct((1, num_i * 128), jnp.float32),
        grid_spec=pltpu.PrefetchScalarGridSpec(
            num_scalar_prefetch=0,
            grid=(num_i, num_j),
            in_specs=[
                pl.BlockSpec(memory_space=pltpu.MemorySpace.SMEM),   # [alpha, margin]
                pl.BlockSpec((tile_nu, 1), lambda i, j: (i, 0)),     # u column tile
                pl.BlockSpec((1, tile_np), lambda i, j: (0, j)),     # p row tile
                pl.BlockSpec((tile_nu, 1), lambda i, j: (i, 0)),     # c column tile
            ],
            out_specs=pl.BlockSpec((1, 128), lambda i, j: (0, i)),   # per-Nu-tile partial
            scratch_shapes=[pltpu.VMEM((tile_nu, tile_np), jnp.float32)],
        ),
        compiler_params=pltpu.CompilerParams(
            dimension_semantics=("parallel", "arbitrary")),
        cost_estimate=cost,
    )(params, u2, p2, c2)

    # Each Nu-tile program broadcasts its partial loss across its 128-lane block;
    # take lane 0 of each block and sum the per-tile partials in XLA.
    return jnp.sum(out[0, ::128])


def _reference_loss(disc_positive, disc_unlabeled, cls_unlabeled, alpha, margin):
    score = disc_unlabeled[:, None] - disc_positive[None, :] + margin
    disc_term = jnp.sum(jnp.maximum(score, 0.0))
    cls_term = jnp.sum((disc_unlabeled - cls_unlabeled) ** 2)
    return disc_term - alpha * cls_term


if __name__ == "__main__":
    key = jax.random.PRNGKey(0)
    k1, k2, k3, k4, k5, k6 = jax.random.split(key, 6)
    alpha, margin = 0.5, 0.1

    # Case 1: tiny shapes consistent with the module (Nu=8 unlabeled, Np=16 positive).
    nu, npos = 8, 16
    p_small = jax.nn.sigmoid(jax.random.normal(k1, (npos,), jnp.float32))
    u_small = jax.nn.sigmoid(jax.random.normal(k2, (nu,), jnp.float32))
    c_small = jax.nn.sigmoid(jax.random.normal(k3, (nu,), jnp.float32))

    loss_small = jax.block_until_ready(
        pan_discriminator_distance_loss(p_small, u_small, c_small,
                                        alpha=alpha, margin=margin))
    ref_small = _reference_loss(p_small, u_small, c_small, alpha, margin)
    assert jnp.allclose(loss_small, ref_small, rtol=1e-5, atol=1e-5), (loss_small, ref_small)

    # Case 2: non-aligned, multi-tile shapes (exercises padding, grid reduction,
    # and the parallel per-Nu-tile partial outputs).
    nu2, npos2 = 1100, 1500
    p_big = jax.nn.sigmoid(jax.random.normal(k4, (npos2,), jnp.float32))
    u_big = jax.nn.sigmoid(jax.random.normal(k5, (nu2,), jnp.float32))
    c_big = jax.nn.sigmoid(jax.random.normal(k6, (nu2,), jnp.float32))

    loss_big = jax.block_until_ready(
        pan_discriminator_distance_loss(p_big, u_big, c_big,
                                        alpha=alpha, margin=margin))
    ref_big = _reference_loss(p_big, u_big, c_big, alpha, margin)
    assert jnp.allclose(loss_big, ref_big, rtol=5e-4, atol=1e-2), (loss_big, ref_big)

    print("KERNEL_OK")
</pallas_src>

<mosaic_0001>
module attributes {stable_mosaic.version = 11 : i64} {
  func.func @_pan_loss_kernel(%arg0: i32, %arg1: i32, %arg2: memref<2xf32, #tpu.memory_space<smem>>, %arg3: memref<8x1xf32, #tpu.memory_space<vmem>>, %arg4: memref<1x128xf32, #tpu.memory_space<vmem>>, %arg5: memref<8x1xf32, #tpu.memory_space<vmem>>, %arg6: memref<1x128xf32, #tpu.memory_space<vmem>>, %arg7: memref<8x128xf32, #tpu.memory_space<vmem>>) attributes {dimension_semantics = [#tpu.dimension_semantics<parallel>, #tpu.dimension_semantics<arbitrary>], iteration_bounds = array<i64: 1, 1>, scalar_prefetch = 0 : i64, scratch_operands = 1 : i64, tpu.core_type = #tpu.core_type<tc>, window_params = [{transform_indices = @transform_0, window_bounds = array<i64: 2>}, {transform_indices = @transform_1, window_bounds = array<i64: 8, 1>}, {transform_indices = @transform_2, window_bounds = array<i64: 1, 128>}, {transform_indices = @transform_3, window_bounds = array<i64: 8, 1>}, {transform_indices = @transform_4, window_bounds = array<i64: 1, 128>}]} {
    %c0 = arith.constant 0 : index
    %0 = memref.load %arg2[%c0] : memref<2xf32, #tpu.memory_space<smem>>
    %c1 = arith.constant 1 : index
    %1 = memref.load %arg2[%c1] : memref<2xf32, #tpu.memory_space<smem>>
    %c0_i32 = arith.constant 0 : i32
    %2 = arith.cmpi eq, %arg1, %c0_i32 : i32
    %3 = arith.extui %2 : i1 to i32
    %c0_i32_0 = arith.constant 0 : i32
    %4 = arith.cmpi ne, %3, %c0_i32_0 : i32
    scf.if %4 {
      %cst_11 = arith.constant 0.000000e+00 : f32
      %20 = vector.broadcast %cst_11 : f32 to vector<8x128xf32>
      %c0_12 = arith.constant 0 : index
      %c0_13 = arith.constant 0 : index
      %21 = vector.load %arg7[%c0_12, %c0_13] : memref<8x128xf32, #tpu.memory_space<vmem>>, vector<8x128xf32>
      tpu.vector_store %arg7[%c0_12, %c0_13], %20 {strides = array<i32>} : memref<8x128xf32, #tpu.memory_space<vmem>>, vector<8x128xf32>,
    } else {
    }
    %c0_1 = arith.constant 0 : index
    %c0_2 = arith.constant 0 : index
    %5 = vector.load %arg3[%c0_1, %c0_2] : memref<8x1xf32, #tpu.memory_space<vmem>>, vector<8x1xf32>
    %6 = vector.broadcast %1 : f32 to vector<8x1xf32>
    %7 = arith.addf %5, %6 : vector<8x1xf32>
    %c0_3 = arith.constant 0 : index
    %c0_4 = arith.constant 0 : index
    %8 = vector.load %arg4[%c0_3, %c0_4] : memref<1x128xf32, #tpu.memory_space<vmem>>, vector<1x128xf32>
    %9 = vector.broadcast %7 : vector<8x1xf32> to vector<8x128xf32>
    %10 = vector.broadcast %8 : vector<1x128xf32> to vector<8x128xf32>
    %11 = arith.subf %9, %10 : vector<8x128xf32>
    %c0_5 = arith.constant 0 : index
    %c0_6 = arith.constant 0 : index
    %12 = vector.load %arg7[%c0_5, %c0_6] : memref<8x128xf32, #tpu.memory_space<vmem>>, vector<8x128xf32>
    %cst = arith.constant 0.000000e+00 : f32
    %13 = vector.broadcast %cst : f32 to vector<8x128xf32>
    %14 = arith.maximumf %11, %13 : vector<8x128xf32>
    %15 = arith.addf %12, %14 : vector<8x128xf32>
    %c0_7 = arith.constant 0 : index
    %c0_8 = arith.constant 0 : index
    %16 = vector.load %arg7[%c0_7, %c0_8] : memref<8x128xf32, #tpu.memory_space<vmem>>, vector<8x128xf32>
    tpu.vector_store %arg7[%c0_7, %c0_8], %15 {strides = array<i32>} : memref<8x128xf32, #tpu.memory_space<vmem>>, vector<8x128xf32>,
    %c0_i32_9 = arith.constant 0 : i32
    %17 = arith.cmpi eq, %arg1, %c0_i32_9 : i32
    %18 = arith.extui %17 : i1 to i32
    %c0_i32_10 = arith.constant 0 : i32
    %19 = arith.cmpi ne, %18, %c0_i32_10 : i32
    scf.if %19 {
      %c0_11 = arith.constant 0 : index
      %c0_12 = arith.constant 0 : index
      %20 = vector.load %arg7[%c0_11, %c0_12] : memref<8x128xf32, #tpu.memory_space<vmem>>, vector<8x128xf32>
      %21 = vector.shape_cast %20 : vector<8x128xf32> to vector<1x8x128xf32>
      %cst_13 = arith.constant dense<0.000000e+00> : vector<1xf32>
      %22 = vector.multi_reduction <add>, %21, %cst_13 [1, 2] : vector<1x8x128xf32> to vector<1xf32>
      %23 = vector.shape_cast %22 : vector<1xf32> to vector<1x1x1xf32>
      %24 = vector.extract %23[0, 0, 0] : f32 from vector<1x1x1xf32>
      %c0_14 = arith.constant 0 : index
      %c0_15 = arith.constant 0 : index
      %25 = vector.load %arg5[%c0_14, %c0_15] : memref<8x1xf32, #tpu.memory_space<vmem>>, vector<8x1xf32>
      %26 = arith.subf %5, %25 : vector<8x1xf32>
      %27 = arith.mulf %26, %26 : vector<8x1xf32>
      %28 = vector.shape_cast %27 : vector<8x1xf32> to vector<1x8x1xf32>
      %cst_16 = arith.constant dense<0.000000e+00> : vector<1xf32>
      %29 = vector.multi_reduction <add>, %28, %cst_16 [1, 2] : vector<1x8x1xf32> to vector<1xf32>
      %30 = vector.shape_cast %29 : vector<1xf32> to vector<1x1x1xf32>
      %31 = vector.extract %30[0, 0, 0] : f32 from vector<1x1x1xf32>
      %32 = arith.mulf %0, %31 : f32
      %33 = arith.subf %24, %32 : f32
      %34 = vector.broadcast %33 : f32 to vector<1x128xf32>
      %c0_17 = arith.constant 0 : index
      %c0_18 = arith.constant 0 : index
      %35 = vector.load %arg6[%c0_17, %c0_18] : memref<1x128xf32, #tpu.memory_space<vmem>>, vector<1x128xf32>
      tpu.vector_store %arg6[%c0_17, %c0_18], %34 {strides = array<i32>} : memref<1x128xf32, #tpu.memory_space<vmem>>, vector<1x128xf32>,
    } else {
    }
    return
  }
  func.func @transform_0(%arg0: i32, %arg1: i32) -> i32 {
    %c0_i32 = arith.constant 0 : i32
    %c0_i32_0 = arith.constant 0 : i32
    return %c0_i32 : i32
  }
  func.func @transform_1(%arg0: i32, %arg1: i32) -> (i32, i32) {
    %c0_i32 = arith.constant 0 : i32
    %c0_i32_0 = arith.constant 0 : i32
    return %arg0, %c0_i32 : i32, i32
  }
  func.func @transform_2(%arg0: i32, %arg1: i32) -> (i32, i32) {
    %c0_i32 = arith.constant 0 : i32
    %c0_i32_0 = arith.constant 0 : i32
    return %c0_i32, %arg1 : i32, i32
  }
  func.func @transform_3(%arg0: i32, %arg1: i32) -> (i32, i32) {
    %c0_i32 = arith.constant 0 : i32
    %c0_i32_0 = arith.constant 0 : i32
    return %arg0, %c0_i32 : i32, i32
  }
  func.func @transform_4(%arg0: i32, %arg1: i32) -> (i32, i32) {
    %c0_i32 = arith.constant 0 : i32
    %c0_i32_0 = arith.constant 0 : i32
    return %c0_i32, %arg0 : i32, i32
  }
}

</mosaic_0001>

<llo_original>
// kernel: tpu_custom_call.1
$region0: #{tpu_custom_call.1}
  #allocation0 [shape = 'u32[]', space=smem, size = 0x4, offset = 0x4, fixed_abs, tag = 'smem constant byte address 0x4 - core index']
  #allocation1 [shape = 'u32[144,128]{1,0:T(1,128)}', space=vmem, size = 0x12000, scoped, tag = 'internal scratch']
  #allocation2 [shape = 'f32[8,128]{1,0:T(8,128)}', space=vmem, size = 0x1000, scoped, tag = 'scratch operand']
  %s0 = inlined_call_operand.vmem [shape: f32[2], index: 0, kind: input, shape index: {}]
  %s1 = inlined_call_operand.vmem [shape: f32[8,1], index: 1, kind: input, shape index: {}]
  %s2 = inlined_call_operand.vmem [shape: f32[1,128], index: 2, kind: input, shape index: {}]
  %s3 = inlined_call_operand.vmem [shape: f32[8,1], index: 3, kind: input, shape index: {}]
  %s4 = inlined_call_operand.hbm [shape: f32[1,128], index: 4, kind: output, shape index: {}]
  %s5 = sld [smem:[#allocation0]]
  $region38: #{tpu_custom_call.1} parent=0
    _
  %s7 = ssub.s32 1, %s5
  %s8 = scalar_select 0, %s7, %s5
  $region1: #{tpu_custom_call.1} parent=0
    #allocation3 [shape = 'u8[512]{0}', space=smem, size = 0x200, scoped, tag = 'input window, operand 0, single buffered']
    #allocation4 [shape = 's32[1]{0}', space=sflag, size = 0x4, scoped, tag = 'scoped memory for tpu_custom_call.1']
    #allocation5 [shape = 's32[1]{0}', space=sflag, size = 0x4, scoped, tag = 'scoped memory for tpu_custom_call.1']
    #allocation6 [shape = 'u8[512]{0}', space=vmem, size = 0x400, scoped, tag = 'output window, operand 0, single buffered']
    %9 = vsyncpa [#allocation5], 0
    %10 = vsyncpa [#allocation4], 0
    // Predicated region
    $region2: #{tpu_custom_call.1} parent=1 // pred_check
      _
    $region3: #{tpu_custom_call.1} parent=1 // pred_check_branch
      %12 = sbr.rel (0) target = $region5
    $region4: #{tpu_custom_call.1} parent=1 // pred_region
      %s14 = ssub.s32 16, 16
      %15 = vsyncadd [#allocation5], %s14
      %s17 = sshll.u32 %s0, 4
      %s18 = int_to_ptr.vmem [resolvable:$true] %s17
      %20 = dma.vmem_to_smem %s18, 16, [#allocation3], [#allocation5]
    $region5: #{tpu_custom_call.1} parent=1 // pred_fallthru
      _
    // Predicated region
    $region6: #{tpu_custom_call.1} parent=1 // pred_check
      _
    $region7: #{tpu_custom_call.1} parent=1 // pred_check_branch
      %22 = sbr.rel (0) target = $region9
    $region8: #{tpu_custom_call.1} parent=1 // pred_region
      _
    $region9: #{tpu_custom_call.1} parent=1 // pred_fallthru
      _
    // Predicated region
    $region10: #{tpu_custom_call.1} parent=1 // pred_check
      _
    $region11: #{tpu_custom_call.1} parent=1 // pred_check_branch
      %24 = sbr.rel (0) target = $region13
    $region12: #{tpu_custom_call.1} parent=1 // pred_region
      _
    $region13: #{tpu_custom_call.1} parent=1 // pred_fallthru
      _
    // Predicated region
    $region14: #{tpu_custom_call.1} parent=1 // pred_check
      _
    $region15: #{tpu_custom_call.1} parent=1 // pred_check_branch
      %26 = sbr.rel (0) target = $region17
    $region16: #{tpu_custom_call.1} parent=1 // pred_region
      _
    $region17: #{tpu_custom_call.1} parent=1 // pred_fallthru
      _
    // Predicated region
    $region18: #{tpu_custom_call.1} parent=1 // pred_check
      _
    $region19: #{tpu_custom_call.1} parent=1 // pred_check_branch
      %28 = sbr.rel (0) target = $region21
    $region20: #{tpu_custom_call.1} parent=1 // pred_region
      %29 = dma.done [#allocation5], 16
    $region21: #{tpu_custom_call.1} parent=1 // pred_fallthru
      _
    %30 = sfence
    %s31 = sld [smem:[#allocation3]]
    %s32 = sld [smem:[#allocation3 + $0x1]]
    %p33 = scmp.eq.s32.totalorder 0, 0
    // Predicated region
    $region22: #{tpu_custom_call.1} parent=1 // pred_check
      %p34 = pneg %p33
    $region23: #{tpu_custom_call.1} parent=1 // pred_check_branch
      %36 = sbr.rel (%p34) target = $region25
    $region24: #{tpu_custom_call.1} parent=1 // pred_region
      %37 = vst [vmem:[#allocation2] sm:$0xff] 0.0
    $region25: #{tpu_custom_call.1} parent=1 // pred_fallthru
      _
    %v38 = vld [vmem:[%s1] sm:$0xff]
    %v39 = vstv %s32
    %v40 = vadd.f32 %v38, %v39
    %v41 = vld [vmem:[%s2] sm:$0x1]
    %43 = vset.pattern.permute.xlu0 0
    %44 = vperm.xlu0 %43, %v40
    %v45 = vpop.permute.xlu0 %44
    %v48 = vlaneseq
    %v49 = vshrl.u32 %v48, 7
    %v50 = vsub.s32 0, %v49
    %v51 = vrot.slane %v41, %v50
    %v53 = vsub.f32 %v45, %v51
    %v54 = vld [vmem:[#allocation2] sm:$0xff]
    %v55 = vmax.f32 %v53, 0.0
    %v56 = vadd.f32 %v54, %v55
    %57 = vst [vmem:[#allocation2] sm:$0xff] %v56
    // Predicated region
    $region26: #{tpu_custom_call.1} parent=1 // pred_check
      %p58 = pneg %p33
    $region27: #{tpu_custom_call.1} parent=1 // pred_check_branch
      %60 = sbr.rel (%p58) target = $region29
    $region28: #{tpu_custom_call.1} parent=1 // pred_region
      %v61 = vld [vmem:[#allocation2] sm:$0xff]
      %62 = vadd.xlane.f32.xlu0 %v61
      %v63 = vpop.xlane.xlu0 %62
      %v64 = vrot.slane %v63, 4
      %v65 = vadd.f32 %v63, %v64
      %v66 = vrot.slane %v65, 2
      %v67 = vadd.f32 %v65, %v66
      %v68 = vrot.slane %v67, 1
      %v69 = vadd.f32 %v67, %v68
      %s70 = vtos %v69
      %v71 = vld [vmem:[%s3] sm:$0xff]
      %v72 = vsub.f32 %v38, %v71
      %v73 = vmul.f32 %v72, %v72
      %vm74 = vcmask 7168
      %v75 = vsel %vm74, %v73, 0.0
      %76 = vadd.xlane.f32.xlu0 %v75
      %v77 = vpop.xlane.xlu0 %76
      %v78 = vrot.slane %v77, 4
      %v79 = vadd.f32 %v77, %v78
      %v80 = vrot.slane %v79, 2
      %v81 = vadd.f32 %v79, %v80
      %v82 = vrot.slane %v81, 1
      %v83 = vadd.f32 %v81, %v82
      %s84 = vtos %v83
      %s85 = smul.f32 %s31, %s84
      %s86 = ssub.f32 %s70, %s85
      %v87 = vstv %s86
      %88 = vst [vmem:[#allocation6] sm:$0x1] %v87
    $region29: #{tpu_custom_call.1} parent=1 // pred_fallthru
      _
    // Predicated region
    $region30: #{tpu_custom_call.1} parent=1 // pred_check
      _
    $region31: #{tpu_custom_call.1} parent=1 // pred_check_branch
      %90 = sbr.rel (0) target = $region33
    $region32: #{tpu_custom_call.1} parent=1 // pred_region
      %s92 = ssub.s32 16, 16
      %93 = vsyncadd [#allocation4], %s92
      %s95 = sshll.u32 [#allocation6], 4
      %s96 = int_to_ptr.vmem [resolvable:$true] %s95
      %98 = dma.vmem_to_hbm [thread:$0]  %s96, 16, %s4, [#allocation4]
    $region33: #{tpu_custom_call.1} parent=1 // pred_fallthru
      _
    // Predicated region
    $region34: #{tpu_custom_call.1} parent=1 // pred_check
      _
    $region35: #{tpu_custom_call.1} parent=1 // pred_check_branch
      %100 = sbr.rel (0) target = $region37
    $region36: #{tpu_custom_call.1} parent=1 // pred_region
      %101 = dma.done [#allocation4], 16
    $region37: #{tpu_custom_call.1} parent=1 // pred_fallthru
      _
    %102 = vsyncpa [#allocation4], 1
    %103 = vsyncpa [#allocation5], 1

</llo_original>
